<compile_context>
chip_gen: v5e
topology: v5e:2x2
jax: 0.10.0
libtpu: 0.0.40
codegen_flags: <defaults>
</compile_context>

<pallas_src>
import jax
import jax.numpy as jnp
from jax.experimental import pallas as pl
from jax.experimental.pallas import tpu as pltpu


def _amax_kernel(x_ref, o_ref):
    # x_ref: (tb, tn) input tile; o_ref: (tb, 1) output tile, resident across
    # the reduction grid axis (same block index for every k) => accumulator.
    k = pl.program_id(1)

    @pl.when(k == 0)
    def _():
        o_ref[...] = jnp.full_like(o_ref, -jnp.inf)

    o_ref[...] = jnp.maximum(
        o_ref[...], jnp.max(x_ref[...], axis=1, keepdims=True)
    )


def _round_up(x, m):
    return ((x + m - 1) // m) * m


def reduce_amax_out_of_order_dim(a: jax.Array) -> jax.Array:
    """Pallas implementation of torch.ops.aten.amax(a, (2, 1, 3))."""
    b, d1, d2, d3 = a.shape
    n = d1 * d2 * d3
    x = a.reshape(b, n)

    # Batch (sublane) tile: exact full dim when small (no padding needed),
    # otherwise a multiple of 8 capped at 128.
    if b <= 8:
        tb = b
    else:
        tb = min(_round_up(b, 8), 128)

    # Reduction (lane) tile: exact full dim when <=128, otherwise a multiple
    # of 128 capped at 8192 (4 MiB f32 block with tb=128).
    if n <= 128:
        tn = n
    else:
        tn = min(_round_up(n, 128), 8192)

    # Pad only if required so the tiles divide the array exactly; -inf is the
    # identity for max (padded batch rows are sliced off afterwards).
    b_pad = _round_up(b, tb)
    n_pad = _round_up(n, tn)
    if (b_pad, n_pad) != (b, n):
        x = jnp.pad(
            x, ((0, b_pad - b), (0, n_pad - n)), constant_values=-jnp.inf
        )

    grid = (b_pad // tb, n_pad // tn)

    out = pl.pallas_call(
        _amax_kernel,
        out_shape=jax.ShapeDtypeStruct((b_pad, 1), jnp.float32),
        grid_spec=pltpu.PrefetchScalarGridSpec(
            num_scalar_prefetch=0,
            grid=grid,
            in_specs=[pl.BlockSpec((tb, tn), lambda i, k: (i, k))],
            out_specs=pl.BlockSpec((tb, 1), lambda i, k: (i, 0)),
        ),
        compiler_params=pltpu.CompilerParams(
            dimension_semantics=("parallel", "arbitrary"),
        ),
        cost_estimate=pl.CostEstimate(
            flops=b_pad * n_pad,
            transcendentals=0,
            bytes_accessed=4 * (b_pad * n_pad + b_pad),
        ),
    )(x)

    return out[:b, 0]


def _reference(a: jax.Array) -> jax.Array:
    return jnp.max(a, axis=(1, 2, 3))


if __name__ == "__main__":
    key = jax.random.PRNGKey(0)
    # Small 4-D float32 input consistent with the module's [-1,-1,-1,-1] spec.
    a = jax.random.normal(key, (2, 4, 16, 16), dtype=jnp.float32)

    out = reduce_amax_out_of_order_dim(a)
    jax.block_until_ready(out)

    ref = _reference(a)
    assert out.shape == (2,), f"bad shape {out.shape}"
    assert jnp.allclose(out, ref, rtol=1e-6, atol=1e-6), (
        f"max abs err {jnp.max(jnp.abs(out - ref))}"
    )
    print("KERNEL_OK")
</pallas_src>

<mosaic_0001>
module attributes {stable_mosaic.version = 11 : i64} {
  func.func @_amax_kernel(%arg0: i32, %arg1: i32, %arg2: memref<2x1024xf32, #tpu.memory_space<vmem>>, %arg3: memref<2x1xf32, #tpu.memory_space<vmem>>) attributes {dimension_semantics = [#tpu.dimension_semantics<parallel>, #tpu.dimension_semantics<arbitrary>], iteration_bounds = array<i64: 1, 1>, scalar_prefetch = 0 : i64, scratch_operands = 0 : i64, tpu.core_type = #tpu.core_type<tc>, window_params = [{transform_indices = @transform_0, window_bounds = array<i64: 2, 1024>}, {transform_indices = @transform_1, window_bounds = array<i64: 2, 1>}]} {
    %c0_i32 = arith.constant 0 : i32
    %0 = arith.cmpi eq, %arg1, %c0_i32 : i32
    %1 = arith.extui %0 : i1 to i32
    %c0_i32_0 = arith.constant 0 : i32
    %2 = arith.cmpi ne, %1, %c0_i32_0 : i32
    scf.if %2 {
      %cst_6 = arith.constant 0xFF800000 : f32
      %9 = vector.broadcast %cst_6 : f32 to vector<2x1xf32>
      %c0_7 = arith.constant 0 : index
      %c0_8 = arith.constant 0 : index
      %10 = vector.load %arg3[%c0_7, %c0_8] : memref<2x1xf32, #tpu.memory_space<vmem>>, vector<2x1xf32>
      tpu.vector_store %arg3[%c0_7, %c0_8], %9 {strides = array<i32>} : memref<2x1xf32, #tpu.memory_space<vmem>>, vector<2x1xf32>,
    } else {
    }
    %c0 = arith.constant 0 : index
    %c0_1 = arith.constant 0 : index
    %3 = vector.load %arg3[%c0, %c0_1] : memref<2x1xf32, #tpu.memory_space<vmem>>, vector<2x1xf32>
    %c0_2 = arith.constant 0 : index
    %c0_3 = arith.constant 0 : index
    %4 = vector.load %arg2[%c0_2, %c0_3] : memref<2x1024xf32, #tpu.memory_space<vmem>>, vector<2x1024xf32>
    %cst = arith.constant dense<0xFF800000> : vector<2xf32>
    %5 = vector.multi_reduction <maximumf>, %4, %cst [1] : vector<2x1024xf32> to vector<2xf32>
    %6 = vector.shape_cast %5 : vector<2xf32> to vector<2x1xf32>
    %7 = arith.maximumf %3, %6 : vector<2x1xf32>
    %c0_4 = arith.constant 0 : index
    %c0_5 = arith.constant 0 : index
    %8 = vector.load %arg3[%c0_4, %c0_5] : memref<2x1xf32, #tpu.memory_space<vmem>>, vector<2x1xf32>
    tpu.vector_store %arg3[%c0_4, %c0_5], %7 {strides = array<i32>} : memref<2x1xf32, #tpu.memory_space<vmem>>, vector<2x1xf32>,
    return
  }
  func.func @transform_0(%arg0: i32, %arg1: i32) -> (i32, i32) {
    %c0_i32 = arith.constant 0 : i32
    return %arg0, %arg1 : i32, i32
  }
  func.func @transform_1(%arg0: i32, %arg1: i32) -> (i32, i32) {
    %c0_i32 = arith.constant 0 : i32
    %c0_i32_0 = arith.constant 0 : i32
    return %arg0, %c0_i32 : i32, i32
  }
}

</mosaic_0001>

<llo_original>
// kernel: tpu_custom_call.1
$region0: #{tpu_custom_call.1}
  #allocation0 [shape = 'u32[]', space=smem, size = 0x4, offset = 0x4, fixed_abs, tag = 'smem constant byte address 0x4 - core index']
  #allocation1 [shape = 'u32[72,128]{1,0:T(1,128)}', space=vmem, size = 0x9000, scoped, tag = 'internal scratch']
  %s0 = inlined_call_operand.hbm [shape: f32[2,1024], index: 0, kind: input, shape index: {}]
  %s1 = inlined_call_operand.vmem [shape: f32[2,1], index: 1, kind: output, shape index: {}]
  %s2 = sld [smem:[#allocation0]]
  $region22: #{tpu_custom_call.1} parent=0
    _
  %s4 = ssub.s32 1, %s2
  %s5 = scalar_select 0, %s4, %s2
  $region1: #{tpu_custom_call.1} parent=0
    #allocation2 [shape = 'u8[8192]{0}', space=vmem, size = 0x2000, scoped, tag = 'input window, operand 0, single buffered']
    #allocation3 [shape = 's32[1]{0}', space=sflag, size = 0x4, scoped, tag = 'scoped memory for tpu_custom_call.1']
    %6 = vsyncpa [#allocation3], 0
    // Predicated region
    $region2: #{tpu_custom_call.1} parent=1 // pred_check
      _
    $region3: #{tpu_custom_call.1} parent=1 // pred_check_branch
      %8 = sbr.rel (0) target = $region5
    $region4: #{tpu_custom_call.1} parent=1 // pred_region
      %10 = vsyncadd [#allocation3], 0
      %s12 = sshll.u32 %s0, 4
      %s13 = int_to_ptr.hbm [resolvable:$true] %s12
      %s14 = sshll.u32 [#allocation2], 4
      %s15 = int_to_ptr.vmem [resolvable:$true] %s14
      %17 = dma.hbm_to_vmem [thread:$0]  %s13, 256, %s15, [#allocation3]
    $region5: #{tpu_custom_call.1} parent=1 // pred_fallthru
      _
    // Predicated region
    $region6: #{tpu_custom_call.1} parent=1 // pred_check
      _
    $region7: #{tpu_custom_call.1} parent=1 // pred_check_branch
      %19 = sbr.rel (0) target = $region9
    $region8: #{tpu_custom_call.1} parent=1 // pred_region
      %21 = dma.done [#allocation3], 256
    $region9: #{tpu_custom_call.1} parent=1 // pred_fallthru
      _
    %p22 = scmp.eq.s32.totalorder 0, 0
    // Predicated region
    $region10: #{tpu_custom_call.1} parent=1 // pred_check
      %p23 = pneg %p22
    $region11: #{tpu_custom_call.1} parent=1 // pred_check_branch
      %25 = sbr.rel (%p23) target = $region13
    $region12: #{tpu_custom_call.1} parent=1 // pred_region
      %vm26 = vcmask 1024
      %27 = vst.msk [vmem:[%s1] sm:$0x3] %vm26, -inf
    $region13: #{tpu_custom_call.1} parent=1 // pred_fallthru
      _
    %v28 = vld [vmem:[%s1] sm:$0x3]
    %v29 = vld [vmem:[#allocation2] sm:$0xff]
    %v30 = vld [vmem:[#allocation2 + $0x8] sm:$0xff]
    %33 = vst [vmem:[#allocation1] ss:$4 sm:$0xff] %v29
    %s34 = scalar_lea.vmem [#allocation1], 32
    %35 = vst [vmem:[%s34] ss:$4 sm:$0xff] %v30
    %v36 = vld.sshfl [vmem:[#allocation1] sm:$0xff pattern:$0x73625140]
    %v37 = vld.sshfl [vmem:[#allocation1 + $0x8] sm:$0xff pattern:$0x73625140]
    %v38 = vld.sshfl [vmem:[#allocation1 + $0x10] sm:$0xff pattern:$0x73625140]
    %v39 = vld.sshfl [vmem:[#allocation1 + $0x18] sm:$0xff pattern:$0x73625140]
    %v40 = vld.sshfl [vmem:[#allocation1 + $0x20] sm:$0xff pattern:$0x73625140]
    %v41 = vld.sshfl [vmem:[#allocation1 + $0x28] sm:$0xff pattern:$0x73625140]
    %v42 = vld.sshfl [vmem:[#allocation1 + $0x30] sm:$0xff pattern:$0x73625140]
    %v43 = vld.sshfl [vmem:[#allocation1 + $0x38] sm:$0xff pattern:$0x73625140]
    %vm52 = vcmask 1041408
    %v53 = vsel %vm52, %v36, -inf
    %v54 = vsel %vm52, %v37, -inf
    %v55 = vsel %vm52, %v38, -inf
    %v56 = vsel %vm52, %v39, -inf
    %v57 = vsel %vm52, %v40, -inf
    %v58 = vmax.f32 %v53, %v57
    %v59 = vsel %vm52, %v41, -inf
    %v60 = vmax.f32 %v54, %v59
    %v61 = vsel %vm52, %v42, -inf
    %v62 = vmax.f32 %v55, %v61
    %v63 = vsel %vm52, %v43, -inf
    %v64 = vmax.f32 %v56, %v63
    %v65 = vmax.f32 %v58, %v60
    %v66 = vmax.f32 %v62, %v64
    %v67 = vmax.f32 %v65, %v66
    %68 = vmax.xlane.f32.xlu0 %v67
    %v69 = vpop.xlane.xlu0 %68
    %v70 = vmax.f32 %v28, %v69
    %vm71 = vcmask 1024
    %72 = vst.msk [vmem:[%s1] sm:$0x3] %vm71, %v70
    // Predicated region
    $region14: #{tpu_custom_call.1} parent=1 // pred_check
      _
    $region15: #{tpu_custom_call.1} parent=1 // pred_check_branch
      %74 = sbr.rel (0) target = $region17
    $region16: #{tpu_custom_call.1} parent=1 // pred_region
      _
    $region17: #{tpu_custom_call.1} parent=1 // pred_fallthru
      _
    // Predicated region
    $region18: #{tpu_custom_call.1} parent=1 // pred_check
      _
    $region19: #{tpu_custom_call.1} parent=1 // pred_check_branch
      %76 = sbr.rel (0) target = $region21
    $region20: #{tpu_custom_call.1} parent=1 // pred_region
      _
    $region21: #{tpu_custom_call.1} parent=1 // pred_fallthru
      _
    %77 = vsyncpa [#allocation3], 1

</llo_original>
